<compile_context>
chip_gen: v7x
topology: tpu7x:2x2x1
jax: 0.10.0
libtpu: 0.0.40
codegen_flags: <defaults>
</compile_context>

<pallas_src>
import functools
import math

import jax
import jax.numpy as jnp
from jax import lax
from jax.experimental import pallas as pl
from jax.experimental.pallas import tpu as pltpu


# --------------------------------------------------------------------------- #
# Kernels
# --------------------------------------------------------------------------- #

def _ln_affine(emb, gb_ref, out_shape, out_dtype):
    """LayerNorm over the last dim (eps=1e-12, biased variance) + affine."""
    mean = jnp.mean(emb, axis=-1, keepdims=True)
    cent = emb - mean
    var = jnp.mean(cent * cent, axis=-1, keepdims=True)
    normed = cent * lax.rsqrt(var + 1e-12)
    out = normed * gb_ref[0:1, :] + gb_ref[1:2, :]
    return out.reshape(out_shape).astype(out_dtype)


def _emb_kernel(x_ref, w_ref, posb_ref, gb_ref, o_ref, *, reps):
    # x_ref:    (TM, D)  bf16 input rows (streamed)
    # w_ref:    (D, D)   bf16 folded weight (W^T + I), resident / single-buffered
    # posb_ref: (P, D)   f32 positional table + Linear bias (P = TM//reps or TM)
    # gb_ref:   (2, D)   f32 [gamma; beta]
    tok = jnp.dot(x_ref[...], w_ref[...], preferred_element_type=jnp.float32)
    posb = posb_ref[...]
    if reps > 1:
        tm, d = tok.shape
        emb = tok.reshape(reps, tm // reps, d) + posb[None, :, :]
    else:
        emb = tok + posb
    o_ref[...] = _ln_affine(emb, gb_ref, o_ref.shape, o_ref.dtype)


def _emb_kernel_ktiled(x_ref, w_ref, posb_ref, gb_ref, o_ref, acc_ref, *, reps):
    # Grid = (row_tiles, k_tiles); contraction axis last ("arbitrary").
    # x_ref: (TM, TK) bf16; w_ref: (TK, D) bf16 streamed; acc_ref: (TM, D) f32 scratch.
    k = pl.program_id(1)

    @pl.when(k == 0)
    def _():
        acc_ref[...] = jnp.zeros_like(acc_ref)

    acc_ref[...] += jnp.dot(x_ref[...], w_ref[...],
                            preferred_element_type=jnp.float32)

    @pl.when(k == pl.num_programs(1) - 1)
    def _():
        tok = acc_ref[...]
        posb = posb_ref[...]
        if reps > 1:
            tm, d = tok.shape
            emb = tok.reshape(reps, tm // reps, d) + posb[None, :, :]
        else:
            emb = tok + posb
        o_ref[...] = _ln_affine(emb, gb_ref, o_ref.shape, o_ref.dtype)


# --------------------------------------------------------------------------- #
# Host-side helpers
# --------------------------------------------------------------------------- #

def _positional_table(seq_len: int, d: int) -> jnp.ndarray:
    """Exactly reproduces PositionalEncoding.P[0, :seq_len, :].

    NOTE: the cos branch intentionally uses 10000**(arange(0, d-1, 2) / (d-1)),
    mirroring the reference module's (unusual) formula.
    """
    pos = jnp.arange(seq_len, dtype=jnp.float32).reshape(-1, 1)
    even_idx = jnp.arange(0, d, 2, dtype=jnp.float32)
    odd_idx = jnp.arange(0, d - 1, 2, dtype=jnp.float32)
    x_sin = pos / jnp.power(10000.0, even_idx / d)
    x_cos = pos / jnp.power(10000.0, odd_idx / (d - 1))
    p = jnp.zeros((seq_len, d), dtype=jnp.float32)
    p = p.at[:, 0::2].set(jnp.sin(x_sin))
    p = p.at[:, 1::2].set(jnp.cos(x_cos))
    return p


def _vmem_capacity_bytes() -> int:
    try:
        return int(pltpu.get_tpu_info().vmem_capacity_bytes)
    except Exception:
        return 64 << 20   # conservative (v7x per-TC) fallback


def _num_cores_hint() -> int:
    try:
        return int(getattr(jax.devices()[0], "num_cores", 1)) or 1
    except Exception:
        return 1


def _resident_spec(block_shape, index_map):
    """Constant-index operand: fetched once, single VMEM buffer."""
    try:
        return pl.BlockSpec(block_shape, index_map, pipeline_mode=pl.Buffered(1))
    except TypeError:  # older API without pipeline_mode: fall back to default buffering
        return pl.BlockSpec(block_shape, index_map)


def _choose_row_tile(B: int, S: int, target_rows: int, prefer_even_grid: bool) -> int:
    """Row tiles align to the positional period: k*S (k | B) or divisors of S."""
    N = B * S
    cands = sorted({k * S for k in range(1, B + 1) if B % k == 0}
                   | {d for d in range(1, S + 1) if S % d == 0})
    cands = [t for t in cands if t % 8 == 0 or t == N]   # sublane rule
    if not cands:
        return N
    feas = [t for t in cands if t <= target_rows] or [cands[0]]
    pick = feas[-1]
    if prefer_even_grid and (N // pick) % 2 != 0:
        even = [t for t in feas if (N // t) % 2 == 0]
        if even:
            pick = even[-1]   # keep both TensorCores busy on v7x
    return pick


def _plan_vmem(tile_rows, S, D, out_itemsize, phys_vmem, k_tile):
    """Decide weight residency vs K-tiling and the vmem_limit hint."""
    budget = int(phys_vmem * 0.78)
    pos_rows = S if tile_rows >= S else tile_rows
    pos_bufs = 1 if tile_rows >= S else 2
    base = (2 * tile_rows * D * 2                 # x (bf16, double-buffered)
            + 2 * tile_rows * D * out_itemsize    # out (double-buffered)
            + pos_bufs * pos_rows * D * 4         # pos+bias table
            + 8 * D * 4)                          # gamma/beta (sublane-padded)
    tk = k_tile
    if tk is None and base + D * D * 2 > budget and D % 128 == 0:
        for cand in (512, 256, 128):
            if D % cand == 0:
                tk = cand
                break
    if tk is not None and (tk % 128 != 0 or D % tk != 0):
        tk = None   # TODO(synk): ragged K-tiling not supported; keep weight resident
    if tk is None:
        need = base + D * D * 2                   # resident bf16 weight, single buffer
    else:
        need = base + 2 * tk * D * 2 + tile_rows * D * 4   # streamed weight + f32 acc
    vmem_limit = int(min(phys_vmem * 0.85, max(need * 1.25, 8 << 20)))
    return tk, vmem_limit


# --------------------------------------------------------------------------- #
# Public wrapper
# --------------------------------------------------------------------------- #

def embeddings_forward(inputs, w, b, gamma, beta, *, target_rows=None,
                       out_dtype=None, k_tile=None):
    """inputs: (B, S, D) f32; w: (D, D) nn.Linear weight (out, in); b/gamma/beta: (D,).

    The module's semantics require ori_feature_dim == embed_dim == input_dim.
    `out_dtype=jnp.bfloat16` halves the output HBM stream if downstream allows it.
    `k_tile` forces the K-tiled (large-D) path with that contraction tile.
    """
    B, S, D = inputs.shape
    N = B * S
    assert w.shape == (D, D), "Embeddings requires ori_feature_dim == embed_dim"
    out_dtype = inputs.dtype if out_dtype is None else jnp.dtype(out_dtype)

    phys_vmem = _vmem_capacity_bytes()
    if target_rows is None:
        # v5e/v6e (128 MiB VMEM) take bigger tiles; v5e is MXU-bound for D >~ 1000
        # anyway, where tile_rows >= 512 keeps M per vmatmul large.
        target_rows = 1024 if phys_vmem >= (100 << 20) else 512
    tile_rows = _choose_row_tile(B, S, target_rows, prefer_even_grid=_num_cores_hint() > 1)
    reps = max(tile_rows // S, 1)

    tk, vmem_limit = _plan_vmem(tile_rows, S, D, out_dtype.itemsize, phys_vmem, k_tile)

    # ---- parameter prep (one-time, wrapper-side) ----
    posb = (_positional_table(S, D) + b.reshape(1, D)).astype(jnp.float32)   # pos + bias
    # Fold the residual:  x @ W^T + b + (x + P)  ==  x @ (W^T + I) + (P + b)
    w_eff = (w.T.astype(jnp.float32) + jnp.eye(D, dtype=jnp.float32)).astype(jnp.bfloat16)
    gb = jnp.stack([gamma.astype(jnp.float32), beta.astype(jnp.float32)], axis=0)  # (2, D)
    x2d = inputs.reshape(N, D).astype(jnp.bfloat16)   # halve the dominant HBM read

    n_row = N // tile_rows

    if tk is None:
        # ---------------- resident-weight path ----------------
        if tile_rows >= S:
            pos_spec = _resident_spec((S, D), lambda i: (0, 0))
        else:
            npb = S // tile_rows
            pos_spec = pl.BlockSpec((tile_rows, D), lambda i, _npb=npb: (i % _npb, 0))
        grid_spec = pltpu.PrefetchScalarGridSpec(
            num_scalar_prefetch=0,
            grid=(n_row,),
            in_specs=[
                pl.BlockSpec((tile_rows, D), lambda i: (i, 0)),        # x (streamed bf16)
                _resident_spec((D, D), lambda i: (0, 0)),              # W^T + I (bf16)
                pos_spec,                                              # pos + bias
                _resident_spec((2, D), lambda i: (0, 0)),              # [gamma; beta]
            ],
            out_specs=pl.BlockSpec((tile_rows, D), lambda i: (i, 0)),
        )
        kernel = functools.partial(_emb_kernel, reps=reps)
        dim_sem = ("parallel",)
    else:
        # ---------------- K-tiled path (large D / v7x) ----------------
        if tile_rows >= S:
            pos_spec = _resident_spec((S, D), lambda i, k: (0, 0))
        else:
            npb = S // tile_rows
            pos_spec = pl.BlockSpec((tile_rows, D), lambda i, k, _npb=npb: (i % _npb, 0))
        grid_spec = pltpu.PrefetchScalarGridSpec(
            num_scalar_prefetch=0,
            grid=(n_row, D // tk),
            in_specs=[
                pl.BlockSpec((tile_rows, tk), lambda i, k: (i, k)),    # x K-chunk (bf16)
                pl.BlockSpec((tk, D), lambda i, k: (k, 0)),            # weight K-block (bf16)
                pos_spec,
                _resident_spec((2, D), lambda i, k: (0, 0)),
            ],
            out_specs=pl.BlockSpec((tile_rows, D), lambda i, k: (i, 0)),
            scratch_shapes=[pltpu.VMEM((tile_rows, D), jnp.float32)],  # f32 accumulator
        )
        kernel = functools.partial(_emb_kernel_ktiled, reps=reps)
        dim_sem = ("parallel", "arbitrary")

    out = pl.pallas_call(
        kernel,
        out_shape=jax.ShapeDtypeStruct((N, D), out_dtype),
        grid_spec=grid_spec,
        compiler_params=pltpu.CompilerParams(
            dimension_semantics=dim_sem,
            vmem_limit_bytes=vmem_limit),
    )(x2d, w_eff, posb, gb)

    return out.reshape(B, S, D)


# --------------------------------------------------------------------------- #
# Pure-JAX reference + smoke test
# --------------------------------------------------------------------------- #

def _reference(inputs, w, b, gamma, beta):
    B, S, D = inputs.shape
    tok = jnp.einsum("bsd,ed->bse", inputs, w) + b
    pos = inputs + _positional_table(S, D)[None, :, :]
    emb = tok + pos
    mean = jnp.mean(emb, axis=-1, keepdims=True)
    var = jnp.mean((emb - mean) ** 2, axis=-1, keepdims=True)
    normed = (emb - mean) / jnp.sqrt(var + 1e-12)
    return normed * gamma + beta


if __name__ == "__main__":
    def _run_case(B, S, D, k_tile=None):
        key = jax.random.PRNGKey(0)
        k_x, k_w, k_b, k_g, k_beta = jax.random.split(key, 5)
        inputs = jax.random.normal(k_x, (B, S, D), dtype=jnp.float32)
        bound = 1.0 / math.sqrt(D)
        w = jax.random.uniform(k_w, (D, D), minval=-bound, maxval=bound, dtype=jnp.float32)
        b = jax.random.uniform(k_b, (D,), minval=-bound, maxval=bound, dtype=jnp.float32)
        gamma = 1.0 + 0.1 * jax.random.normal(k_g, (D,), dtype=jnp.float32)
        beta = 0.1 * jax.random.normal(k_beta, (D,), dtype=jnp.float32)

        out = jax.block_until_ready(
            embeddings_forward(inputs, w, b, gamma, beta, k_tile=k_tile))
        ref = _reference(inputs, w, b, gamma, beta)
        assert out.shape == (B, S, D)
        max_err = float(jnp.max(jnp.abs(out - ref)))
        # bf16 input/weight streaming (f32 accumulate + f32 LayerNorm) vs f32 reference.
        # TODO(synk): re-validate tolerance at production D (error grows ~sqrt(D)).
        assert jnp.allclose(out, ref, atol=5e-2, rtol=5e-2), \
            f"mismatch vs reference (max abs err {max_err})"
        return max_err

    # 1) small-D smoke test (resident-weight path), module-scale shapes
    _run_case(2, 8, 32)
    # 2) K-tiled ("arbitrary" contraction axis) path, still small
    _run_case(2, 8, 256, k_tile=128)

    print("KERNEL_OK")
</pallas_src>

<mosaic_0001>
module attributes {stable_mosaic.version = 11 : i64} {
  func.func @_emb_kernel(%arg0: i32, %arg1: memref<16x32xbf16, #tpu.memory_space<vmem>>, %arg2: memref<32x32xbf16, #tpu.memory_space<vmem>>, %arg3: memref<8x32xf32, #tpu.memory_space<vmem>>, %arg4: memref<2x32xf32, #tpu.memory_space<vmem>>, %arg5: memref<16x32xf32, #tpu.memory_space<vmem>>) attributes {dimension_semantics = [#tpu.dimension_semantics<parallel>], iteration_bounds = array<i64: 1>, scalar_prefetch = 0 : i64, scratch_operands = 0 : i64, tpu.core_type = #tpu.core_type<tc>, window_params = [{transform_indices = @transform_0, window_bounds = array<i64: 16, 32>}, {pipeline_mode = #tpu.pipeline_mode<synchronous>, transform_indices = @transform_1, window_bounds = array<i64: 32, 32>}, {pipeline_mode = #tpu.pipeline_mode<synchronous>, transform_indices = @transform_2, window_bounds = array<i64: 8, 32>}, {pipeline_mode = #tpu.pipeline_mode<synchronous>, transform_indices = @transform_3, window_bounds = array<i64: 2, 32>}, {transform_indices = @transform_4, window_bounds = array<i64: 16, 32>}]} {
    %c0 = arith.constant 0 : index
    %c0_0 = arith.constant 0 : index
    %0 = vector.load %arg1[%c0, %c0_0] : memref<16x32xbf16, #tpu.memory_space<vmem>>, vector<16x32xbf16>
    %c0_1 = arith.constant 0 : index
    %c0_2 = arith.constant 0 : index
    %1 = vector.load %arg2[%c0_1, %c0_2] : memref<32x32xbf16, #tpu.memory_space<vmem>>, vector<32x32xbf16>
    %cst = arith.constant dense<0.000000e+00> : vector<16x32xf32>
    %2 = tpu.matmul %0, %1, %cst {dimension_numbers = #tpu.dot_dimension_numbers<[1], [0], [0], [1], [0, 0, 1, 1], [], []>} : vector<16x32xbf16>, vector<32x32xbf16>, vector<16x32xf32> -> vector<16x32xf32>
    %c0_3 = arith.constant 0 : index
    %c0_4 = arith.constant 0 : index
    %3 = vector.load %arg3[%c0_3, %c0_4] : memref<8x32xf32, #tpu.memory_space<vmem>>, vector<8x32xf32>
    %4 = vector.shape_cast %2 : vector<16x32xf32> to vector<2x8x32xf32>
    %5 = vector.shape_cast %3 : vector<8x32xf32> to vector<1x8x32xf32>
    %6 = vector.broadcast %5 : vector<1x8x32xf32> to vector<2x8x32xf32>
    %7 = arith.addf %4, %6 : vector<2x8x32xf32>
    %cst_5 = arith.constant dense<0.000000e+00> : vector<2x8xf32>
    %8 = vector.multi_reduction <add>, %7, %cst_5 [2] : vector<2x8x32xf32> to vector<2x8xf32>
    %9 = vector.shape_cast %8 : vector<2x8xf32> to vector<2x8x1xf32>
    %cst_6 = arith.constant 3.200000e+01 : f32
    %10 = vector.broadcast %cst_6 : f32 to vector<2x8x1xf32>
    %11 = arith.divf %9, %10 : vector<2x8x1xf32>
    %12 = vector.broadcast %11 : vector<2x8x1xf32> to vector<2x8x32xf32>
    %13 = arith.subf %7, %12 : vector<2x8x32xf32>
    %14 = arith.mulf %13, %13 : vector<2x8x32xf32>
    %cst_7 = arith.constant dense<0.000000e+00> : vector<2x8xf32>
    %15 = vector.multi_reduction <add>, %14, %cst_7 [2] : vector<2x8x32xf32> to vector<2x8xf32>
    %16 = vector.shape_cast %15 : vector<2x8xf32> to vector<2x8x1xf32>
    %cst_8 = arith.constant 3.200000e+01 : f32
    %17 = vector.broadcast %cst_8 : f32 to vector<2x8x1xf32>
    %18 = arith.divf %16, %17 : vector<2x8x1xf32>
    %cst_9 = arith.constant 9.99999996E-13 : f32
    %19 = vector.broadcast %cst_9 : f32 to vector<2x8x1xf32>
    %20 = arith.addf %18, %19 : vector<2x8x1xf32>
    %21 = math.rsqrt %20 : vector<2x8x1xf32>
    %22 = vector.broadcast %21 : vector<2x8x1xf32> to vector<2x8x32xf32>
    %23 = arith.mulf %13, %22 : vector<2x8x32xf32>
    %c0_10 = arith.constant 0 : index
    %c0_11 = arith.constant 0 : index
    %24 = vector.load %arg4[%c0_10, %c0_11] : memref<2x32xf32, #tpu.memory_space<vmem>>, vector<1x32xf32>
    %25 = vector.shape_cast %24 : vector<1x32xf32> to vector<1x1x32xf32>
    %26 = vector.broadcast %25 : vector<1x1x32xf32> to vector<2x8x32xf32>
    %27 = arith.mulf %23, %26 : vector<2x8x32xf32>
    %c1 = arith.constant 1 : index
    %c0_12 = arith.constant 0 : index
    %28 = vector.load %arg4[%c1, %c0_12] : memref<2x32xf32, #tpu.memory_space<vmem>>, vector<1x32xf32>
    %29 = vector.shape_cast %28 : vector<1x32xf32> to vector<1x1x32xf32>
    %30 = vector.broadcast %29 : vector<1x1x32xf32> to vector<2x8x32xf32>
    %31 = arith.addf %27, %30 : vector<2x8x32xf32>
    %32 = vector.shape_cast %31 : vector<2x8x32xf32> to vector<16x32xf32>
    %c0_13 = arith.constant 0 : index
    %c0_14 = arith.constant 0 : index
    %33 = vector.load %arg5[%c0_13, %c0_14] : memref<16x32xf32, #tpu.memory_space<vmem>>, vector<16x32xf32>
    tpu.vector_store %arg5[%c0_13, %c0_14], %32 {strides = array<i32>} : memref<16x32xf32, #tpu.memory_space<vmem>>, vector<16x32xf32>,
    return
  }
  func.func @transform_0(%arg0: i32) -> (i32, i32) {
    %c0_i32 = arith.constant 0 : i32
    %c0_i32_0 = arith.constant 0 : i32
    return %arg0, %c0_i32 : i32, i32
  }
  func.func @transform_1(%arg0: i32) -> (i32, i32) {
    %c0_i32 = arith.constant 0 : i32
    %c0_i32_0 = arith.constant 0 : i32
    %c0_i32_1 = arith.constant 0 : i32
    return %c0_i32, %c0_i32_0 : i32, i32
  }
  func.func @transform_2(%arg0: i32) -> (i32, i32) {
    %c0_i32 = arith.constant 0 : i32
    %c0_i32_0 = arith.constant 0 : i32
    %c0_i32_1 = arith.constant 0 : i32
    return %c0_i32, %c0_i32_0 : i32, i32
  }
  func.func @transform_3(%arg0: i32) -> (i32, i32) {
    %c0_i32 = arith.constant 0 : i32
    %c0_i32_0 = arith.constant 0 : i32
    %c0_i32_1 = arith.constant 0 : i32
    return %c0_i32, %c0_i32_0 : i32, i32
  }
  func.func @transform_4(%arg0: i32) -> (i32, i32) {
    %c0_i32 = arith.constant 0 : i32
    %c0_i32_0 = arith.constant 0 : i32
    return %arg0, %c0_i32 : i32, i32
  }
}

</mosaic_0001>

<llo_original>
// kernel: tpu_custom_call.1
$region0: #{tpu_custom_call.1}
  #allocation0 [shape = 'u32[]', space=smem, size = 0x4, offset = 0x4, fixed_abs, tag = 'smem constant byte address 0x4 - core index']
  #allocation1 [shape = 'u32[144,128]{1,0:T(1,128)}', space=vmem, size = 0x12000, scoped, tag = 'internal scratch']
  %s0 = inlined_call_operand.hbm [shape: bf16[16,32], index: 0, kind: input, shape index: {}]
  %s1 = inlined_call_operand.hbm [shape: bf16[32,32], index: 1, kind: input, shape index: {}]
  %s2 = inlined_call_operand.hbm [shape: f32[8,32], index: 2, kind: input, shape index: {}]
  %s3 = inlined_call_operand.vmem [shape: f32[2,32], index: 3, kind: input, shape index: {}]
  %s4 = inlined_call_operand.hbm [shape: f32[16,32], index: 4, kind: output, shape index: {}]
  %s5 = sld [smem:[#allocation0]]
  $region38: #{tpu_custom_call.1} parent=0
    _
  %s7 = ssub.s32 1, %s5
  %s8 = scalar_select 0, %s7, %s5
  $region1: #{tpu_custom_call.1} parent=0
    #allocation2 [shape = 'u8[4096]{0}', space=vmem, size = 0x1000, scoped, tag = 'input window, operand 0, single buffered']
    #allocation3 [shape = 's32[1]{0}', space=sflag, size = 0x4, scoped, tag = 'scoped memory for tpu_custom_call.1']
    #allocation4 [shape = 's32[1]{0}', space=sflag, size = 0x4, scoped, tag = 'scoped memory for tpu_custom_call.1']
    #allocation5 [shape = 'u8[8192]{0}', space=vmem, size = 0x2000, scoped, tag = 'input window, operand 1, single buffered']
    #allocation6 [shape = 's32[1]{0}', space=sflag, size = 0x4, scoped, tag = 'scoped memory for tpu_custom_call.1']
    #allocation7 [shape = 'u8[4096]{0}', space=vmem, size = 0x1000, scoped, tag = 'input window, operand 2, single buffered']
    #allocation8 [shape = 'u8[8192]{0}', space=vmem, size = 0x2000, scoped, tag = 'output window, operand 0, single buffered']
    %9 = vsyncpa [#allocation3], 0
    %10 = vsyncpa [#allocation6], 0
    %11 = vsyncpa [#allocation4], 0
    // Predicated region
    $region2: #{tpu_custom_call.1} parent=1 // pred_check
      _
    $region3: #{tpu_custom_call.1} parent=1 // pred_check_branch
      %13 = sbr.rel (0) target = $region5
    $region4: #{tpu_custom_call.1} parent=1 // pred_region
      %s15 = ssub.s32 128, 128
      %16 = vsyncadd [#allocation3], %s15
      %s17 = sshll.u32 [#allocation2], 4
      %s18 = int_to_ptr.vmem [resolvable:$true] %s17
      %23 = dma.hbm_to_vmem [thread:$0]  %s0, 128, %s18, [#allocation3], 64, 64, 4
    $region5: #{tpu_custom_call.1} parent=1 // pred_fallthru
      _
    // Predicated region
    $region6: #{tpu_custom_call.1} parent=1 // pred_check
      _
    $region7: #{tpu_custom_call.1} parent=1 // pred_check_branch
      %25 = sbr.rel (0) target = $region9
    $region8: #{tpu_custom_call.1} parent=1 // pred_region
      %s27 = ssub.s32 256, 256
      %28 = vsyncadd [#allocation6], %s27
      %s29 = sshll.u32 [#allocation5], 4
      %s30 = int_to_ptr.vmem [resolvable:$true] %s29
      %35 = dma.hbm_to_vmem [thread:$0]  %s1, 256, %s30, [#allocation6], 64, 64, 4
    $region9: #{tpu_custom_call.1} parent=1 // pred_fallthru
      _
    // Predicated region
    $region10: #{tpu_custom_call.1} parent=1 // pred_check
      _
    $region11: #{tpu_custom_call.1} parent=1 // pred_check_branch
      %37 = sbr.rel (0) target = $region13
    $region12: #{tpu_custom_call.1} parent=1 // pred_region
      %s39 = ssub.s32 128, 128
      %40 = vsyncadd [#allocation6], %s39
      %s42 = sshll.u32 [#allocation7], 4
      %s43 = int_to_ptr.vmem [resolvable:$true] %s42
      %45 = dma.hbm_to_vmem [thread:$0]  %s2, 128, %s43, [#allocation6]
    $region13: #{tpu_custom_call.1} parent=1 // pred_fallthru
      _
    // Predicated region
    $region14: #{tpu_custom_call.1} parent=1 // pred_check
      _
    $region15: #{tpu_custom_call.1} parent=1 // pred_check_branch
      %47 = sbr.rel (0) target = $region17
    $region16: #{tpu_custom_call.1} parent=1 // pred_region
      _
    $region17: #{tpu_custom_call.1} parent=1 // pred_fallthru
      _
    // Predicated region
    $region18: #{tpu_custom_call.1} parent=1 // pred_check
      _
    $region19: #{tpu_custom_call.1} parent=1 // pred_check_branch
      %49 = sbr.rel (0) target = $region21
    $region20: #{tpu_custom_call.1} parent=1 // pred_region
      %50 = dma.done [#allocation3], 128
    $region21: #{tpu_custom_call.1} parent=1 // pred_fallthru
      _
    // Predicated region
    $region22: #{tpu_custom_call.1} parent=1 // pred_check
      _
    $region23: #{tpu_custom_call.1} parent=1 // pred_check_branch
      %52 = sbr.rel (0) target = $region25
    $region24: #{tpu_custom_call.1} parent=1 // pred_region
      %53 = dma.done [#allocation6], 256
    $region25: #{tpu_custom_call.1} parent=1 // pred_fallthru
      _
    // Predicated region
    $region26: #{tpu_custom_call.1} parent=1 // pred_check
      _
    $region27: #{tpu_custom_call.1} parent=1 // pred_check_branch
      %55 = sbr.rel (0) target = $region29
    $region28: #{tpu_custom_call.1} parent=1 // pred_region
      %56 = dma.done [#allocation6], 128
    $region29: #{tpu_custom_call.1} parent=1 // pred_fallthru
      _
    %v58 = vld [vmem:[#allocation2] sm:$0xf]
    %v59 = vld [vmem:[#allocation2 + $0x4] sm:$0xf]
    %v60 = vld [vmem:[#allocation5] sm:$0xf]
    %v61 = vld [vmem:[#allocation5 + $0x4] sm:$0xf]
    %v62 = vld [vmem:[#allocation5 + $0x8] sm:$0xf]
    %v63 = vld [vmem:[#allocation5 + $0xc] sm:$0xf]
    %v66 = vunpack.c.l.b16 %v58
    %v67 = vunpack.c.l.b16 %v59
    %v68 = vpack.c.b16 %v67, %v66
    %v73 = vunpack.c.l.b16 %v60
    %v74 = vunpack.c.l.b16 %v61
    %v75 = vunpack.c.l.b16 %v62
    %v76 = vunpack.c.l.b16 %v63
    %v77 = vpack.c.b16 %v74, %v73
    %v78 = vpack.c.b16 %v76, %v75
    %vm81 = vcmask 261120
    %v83 = vsel %vm81, %v68, 0
    %85 = vmatprep.subr.bf16.mxu0 0
    %86 = vmatpush1.bf16.msra.mxu0 %v77
    %87 = vmatprep.subr.bf16.mxu0 0
    %88 = vmatpush1.bf16.msra.mxu0 %v78
    %89 = vmatprep.subr.bf16.mxu0 0
    %90 = vmatpush1.bf16.msra.mxu0 0
    %91 = vmatprep.subr.bf16.mxu0 0
    %92 = vmatpush1.bf16.msra.mxu0 0
    %93 = vmatprep.subr.bf16.mxu0 0
    %94 = vmatpush1.bf16.msra.mxu0 0
    %95 = vmatprep.subr.bf16.mxu0 0
    %96 = vmatpush1.bf16.msra.mxu0 0
    %97 = vmatprep.subr.bf16.mxu0 0
    %98 = vmatpush1.bf16.msra.mxu0 0
    %99 = vmatprep.subr.bf16.mxu0 0
    %100 = vmatpush1.bf16.msra.mxu0 0
    %101 = vmatprep.subr.bf16.mxu0 0
    %102 = vmatpush1.bf16.msra.mxu0 0
    %103 = vmatprep.subr.bf16.mxu0 0
    %104 = vmatpush1.bf16.msra.mxu0 0
    %105 = vmatprep.subr.bf16.mxu0 0
    %106 = vmatpush1.bf16.msra.mxu0 0
    %107 = vmatprep.subr.bf16.mxu0 0
    %108 = vmatpush1.bf16.msra.mxu0 0
    %109 = vmatprep.subr.bf16.mxu0 0
    %110 = vmatpush1.bf16.msra.mxu0 0
    %111 = vmatprep.subr.bf16.mxu0 0
    %112 = vmatpush1.bf16.msra.mxu0 0
    %113 = vmatprep.subr.bf16.mxu0 0
    %114 = vmatpush1.bf16.msra.mxu0 0
    %115 = vmatprep.subr.bf16.mxu0 0
    %116 = vmatpush1.bf16.msra.mxu0 0
    %117 = vmatprep.mubr.bf16.mxu0 0
    %118 = vmatmul.mubr.bf16.gmra.mrb[0].mxu0 %v83
    %v119 = vpop.f32.mrb[0].mxu0
    %v120 = vadd.f32 0.0, %v119
    %v121 = vpop.f32.mrb[0].mxu0
    %v122 = vpop.f32.mrb[0].mxu0
    %v123 = vadd.f32 0.0, %v122
    %v124 = vpop.f32.mrb[0].mxu0
    %125 = vdwg.mxu0
    %v126 = vld [vmem:[#allocation7] sm:$0xff]
    %v127 = vadd.f32 %v120, %v126
    %v128 = vadd.f32 %v123, %v126
    %v129 = vsel %vm81, %v127, 0.0
    %130 = vadd.xlane.f32.xlu0 %v129
    %v131 = vpop.xlane.xlu0 %130
    %v132 = vsel %vm81, %v128, 0.0
    %133 = vadd.xlane.f32.xlu0 %v132
    %v134 = vpop.xlane.xlu0 %133
    %v135 = vrcp.pop 32.0
    %v136 = vmul.f32 %v131, %v135
    %v137 = vmul.f32 %v134, %v135
    %v138 = vsub.f32 %v127, %v136
    %v139 = vsub.f32 %v128, %v137
    %v140 = vmul.f32 %v138, %v138
    %v141 = vmul.f32 %v139, %v139
    %v142 = vsel %vm81, %v140, 0.0
    %143 = vadd.xlane.f32.xlu0 %v142
    %v144 = vpop.xlane.xlu0 %143
    %v145 = vsel %vm81, %v141, 0.0
    %146 = vadd.xlane.f32.xlu0 %v145
    %v147 = vpop.xlane.xlu0 %146
    %v148 = vmul.f32 %v144, %v135
    %v149 = vmul.f32 %v147, %v135
    %v150 = vadd.f32 %v148, 1e-12
    %v151 = vadd.f32 %v149, 1e-12
    %v152 = vrsqrt.pop %v150
    %v153 = vrsqrt.pop %v151
    %v154 = vmul.f32 %v138, %v152
    %v155 = vmul.f32 %v139, %v153
    %v156 = vld [vmem:[%s3] sm:$0x1]
    %v157 = vlaneseq
    %v158 = vshrl.u32 %v157, 7
    %v159 = vsub.s32 0, %v158
    %v160 = vrot.slane %v156, %v159
    %v161 = vmul.f32 %v154, %v160
    %v162 = vmul.f32 %v155, %v160
    %v163 = vld [vmem:[%s3 + $0x1] sm:$0x1]
    %v164 = vlaneseq
    %v165 = vshrl.u32 %v164, 7
    %v166 = vsub.s32 0, %v165
    %v167 = vrot.slane %v163, %v166
    %v168 = vadd.f32 %v161, %v167
    %v169 = vadd.f32 %v162, %v167
    %170 = vst.msk [vmem:[#allocation8] sm:$0xff] %vm81, %v168
    %171 = vst.msk [vmem:[#allocation8 + $0x8] sm:$0xff] %vm81, %v169
    // Predicated region
    $region30: #{tpu_custom_call.1} parent=1 // pred_check
      _
    $region31: #{tpu_custom_call.1} parent=1 // pred_check_branch
      %173 = sbr.rel (0) target = $region33
    $region32: #{tpu_custom_call.1} parent=1 // pred_region
      %s175 = ssub.s32 256, 256
      %176 = vsyncadd [#allocation4], %s175
      %s177 = sshll.u32 [#allocation8], 4
      %s178 = int_to_ptr.vmem [resolvable:$true] %s177
      %183 = dma.vmem_to_hbm [thread:$0]  %s178, 256, %s4, [#allocation4], 128, 128, 8
    $region33: #{tpu_custom_call.1} parent=1 // pred_fallthru
      _
    // Predicated region
    $region34: #{tpu_custom_call.1} parent=1 // pred_check
      _
    $region35: #{tpu_custom_call.1} parent=1 // pred_check_branch
      %185 = sbr.rel (0) target = $region37
    $region36: #{tpu_custom_call.1} parent=1 // pred_region
      %186 = dma.done [#allocation4], 256
    $region37: #{tpu_custom_call.1} parent=1 // pred_fallthru
      _
    %187 = vsyncpa [#allocation3], 1
    %188 = vsyncpa [#allocation6], 1
    %189 = vsyncpa [#allocation4], 1

</llo_original>
